<compile_context>
chip_gen: v7x
topology: tpu7x:2x2x1
jax: 0.10.0
libtpu: 0.0.40
codegen_flags: <defaults>
</compile_context>

<pallas_src>
import functools

import jax
import jax.numpy as jnp
from jax.experimental import pallas as pl
from jax.experimental.pallas import tpu as pltpu


def _round_up(x, m):
    return ((x + m - 1) // m) * m


def _cdiv(a, b):
    return -(-a // b)


def _pick_tile(size, max_tile, align):
    """Largest aligned tile <= max_tile that minimizes zero padding of `size`.

    `max_tile` must itself be a multiple of `align`.
    """
    size_a = _round_up(size, align)
    if size_a <= max_tile:
        return size_a
    n0 = _cdiv(size_a, max_tile)
    best_pad, best_tile = None, None
    for nb in range(n0, n0 + 3):  # try a few block counts, keep least padding
        tile = _round_up(_cdiv(size_a, nb), align)
        if tile > max_tile:
            continue
        pad = nb * tile - size_a
        if best_pad is None or pad < best_pad:
            best_pad, best_tile = pad, tile
    return best_tile


# ---------------------------------------------------------------------------
# Tiled linear (x @ w + b):   [M, K] @ [K, N] + [N]
# ---------------------------------------------------------------------------
def _linear_kernel_single_k(x_ref, w_ref, b_ref, o_ref):
    acc = jnp.dot(x_ref[...], w_ref[...], preferred_element_type=jnp.float32)
    o_ref[...] = (acc + b_ref[...].astype(jnp.float32)).astype(o_ref.dtype)


def _linear_kernel_multi_k(x_ref, w_ref, b_ref, o_ref, acc_ref):
    @pl.when(pl.program_id(2) == 0)
    def _():
        acc_ref[...] = jnp.zeros_like(acc_ref)

    acc_ref[...] += jnp.dot(
        x_ref[...], w_ref[...], preferred_element_type=jnp.float32
    )

    @pl.when(pl.program_id(2) == pl.num_programs(2) - 1)
    def _():
        o_ref[...] = (acc_ref[...] + b_ref[...].astype(jnp.float32)).astype(o_ref.dtype)


def linear_pallas(x2d, w, bias=None, *, tm_max=256, tn_max=256, tk_max=1024):
    """x2d: [M, K], w: [K, N], bias: [N] or None -> [M, N]."""
    M, K = x2d.shape
    Kw, N = w.shape
    assert K == Kw

    tm = _pick_tile(M, tm_max, 8)
    tn = _pick_tile(N, tn_max, 128)
    tk = _pick_tile(K, tk_max, 128)
    Mp, Np, Kp = _round_up(M, tm), _round_up(N, tn), _round_up(K, tk)

    xp = x2d if (Mp == M and Kp == K) else jnp.pad(x2d, ((0, Mp - M), (0, Kp - K)))
    wp = w if (Kp == K and Np == N) else jnp.pad(w, ((0, Kp - K), (0, Np - N)))
    b = bias if bias is not None else jnp.zeros((N,), dtype=x2d.dtype)
    bp = jnp.pad(b, (0, Np - N)).reshape(1, Np)

    n_k = Kp // tk
    if n_k == 1:
        # Single K tile: no accumulator scratch round-trip needed.
        out = pl.pallas_call(
            _linear_kernel_single_k,
            out_shape=jax.ShapeDtypeStruct((Mp, Np), x2d.dtype),
            grid_spec=pltpu.PrefetchScalarGridSpec(
                num_scalar_prefetch=0,
                grid=(Mp // tm, Np // tn),
                in_specs=[
                    pl.BlockSpec((tm, Kp), lambda i, j: (i, 0)),
                    pl.BlockSpec((Kp, tn), lambda i, j: (0, j)),
                    pl.BlockSpec((1, tn), lambda i, j: (0, j)),
                ],
                out_specs=pl.BlockSpec((tm, tn), lambda i, j: (i, j)),
            ),
            compiler_params=pltpu.CompilerParams(
                dimension_semantics=("parallel", "parallel")
            ),
        )(xp, wp, bp)
    else:
        out = pl.pallas_call(
            _linear_kernel_multi_k,
            out_shape=jax.ShapeDtypeStruct((Mp, Np), x2d.dtype),
            grid_spec=pltpu.PrefetchScalarGridSpec(
                num_scalar_prefetch=0,
                grid=(Mp // tm, Np // tn, n_k),
                in_specs=[
                    pl.BlockSpec((tm, tk), lambda i, j, k: (i, k)),
                    pl.BlockSpec((tk, tn), lambda i, j, k: (k, j)),
                    pl.BlockSpec((1, tn), lambda i, j, k: (0, j)),
                ],
                out_specs=pl.BlockSpec((tm, tn), lambda i, j, k: (i, j)),
                scratch_shapes=[pltpu.VMEM((tm, tn), jnp.float32)],
            ),
            compiler_params=pltpu.CompilerParams(
                dimension_semantics=("parallel", "parallel", "arbitrary")
            ),
        )(xp, wp, bp)

    if Mp == M and Np == N:
        return out
    return out[:M, :N]


# ---------------------------------------------------------------------------
# Flash attention (online softmax) over [B*H, N, Dh]
# ---------------------------------------------------------------------------
def _flash_attn_kernel(q_ref, k_ref, v_ref, o_ref, m_sc, l_sc, acc_sc, *,
                       scale, kv_len, tkv, need_mask):
    kv_idx = pl.program_id(2)

    @pl.when(kv_idx == 0)
    def _():
        m_sc[...] = jnp.full_like(m_sc, -1e30)
        l_sc[...] = jnp.zeros_like(l_sc)
        acc_sc[...] = jnp.zeros_like(acc_sc)

    q = q_ref[0].astype(jnp.float32) * scale                  # (tq, Dh)
    k = k_ref[0].astype(jnp.float32)                          # (tkv, Dh)
    s = jnp.dot(q, k.T, preferred_element_type=jnp.float32)   # (tq, tkv)

    if need_mask:
        key_ids = kv_idx * tkv + jax.lax.broadcasted_iota(jnp.int32, s.shape, 1)
        s = jnp.where(key_ids < kv_len, s, -1e30)

    m_prev = m_sc[...]
    m_new = jnp.maximum(m_prev, s.max(axis=-1, keepdims=True))
    alpha = jnp.exp(m_prev - m_new)
    p = jnp.exp(s - m_new)

    l_sc[...] = alpha * l_sc[...] + p.sum(axis=-1, keepdims=True)
    acc_sc[...] = alpha * acc_sc[...] + jnp.dot(
        p.astype(v_ref.dtype), v_ref[0], preferred_element_type=jnp.float32
    )
    m_sc[...] = m_new

    @pl.when(kv_idx == pl.num_programs(2) - 1)
    def _():
        o_ref[0] = (acc_sc[...] * pl.reciprocal(l_sc[...], approx=False)).astype(o_ref.dtype)


def flash_attention_pallas(q, k, v, scale, *, tq_max=256, tkv_max=256):
    """q, k, v: [BH, N, Dh] -> [BH, N, Dh]."""
    BH, N, Dh = q.shape
    tq = _pick_tile(N, tq_max, 8)
    tkv = _pick_tile(N, tkv_max, 8)
    Nqp = _round_up(N, tq)
    Nkp = _round_up(N, tkv)

    qp = q if Nqp == N else jnp.pad(q, ((0, 0), (0, Nqp - N), (0, 0)))
    kp = k if Nkp == N else jnp.pad(k, ((0, 0), (0, Nkp - N), (0, 0)))
    vp = v if Nkp == N else jnp.pad(v, ((0, 0), (0, Nkp - N), (0, 0)))

    grid = (BH, Nqp // tq, Nkp // tkv)
    kernel = functools.partial(
        _flash_attn_kernel, scale=scale, kv_len=N, tkv=tkv, need_mask=(Nkp != N)
    )

    out = pl.pallas_call(
        kernel,
        out_shape=jax.ShapeDtypeStruct((BH, Nqp, Dh), q.dtype),
        grid_spec=pltpu.PrefetchScalarGridSpec(
            num_scalar_prefetch=0,
            grid=grid,
            in_specs=[
                pl.BlockSpec((1, tq, Dh), lambda b, i, j: (b, i, 0)),
                pl.BlockSpec((1, tkv, Dh), lambda b, i, j: (b, j, 0)),
                pl.BlockSpec((1, tkv, Dh), lambda b, i, j: (b, j, 0)),
            ],
            out_specs=pl.BlockSpec((1, tq, Dh), lambda b, i, j: (b, i, 0)),
            scratch_shapes=[
                pltpu.VMEM((tq, 1), jnp.float32),
                pltpu.VMEM((tq, 1), jnp.float32),
                pltpu.VMEM((tq, Dh), jnp.float32),
            ],
        ),
        compiler_params=pltpu.CompilerParams(
            dimension_semantics=("parallel", "parallel", "arbitrary")
        ),
    )(qp, kp, vp)
    if Nqp == N:
        return out
    return out[:, :N, :]


# ---------------------------------------------------------------------------
# Full Attention.forward (split_attn=False path, dropout p=0 -> identity)
# ---------------------------------------------------------------------------
def attention_forward(x, w_qkv, w_proj, b_proj, num_heads,
                      q_bias=None, v_bias=None, qk_scale=None):
    """x: [B, N, C]; w_qkv: [3*all_head_dim, C]; w_proj: [C, all_head_dim]; b_proj: [C]."""
    B, N, C = x.shape
    all_head_dim = w_qkv.shape[0] // 3
    head_dim = all_head_dim // num_heads
    scale = qk_scale if qk_scale is not None else head_dim ** (-0.5)

    # QKV projection (qkv_bias=False by default -> bias None).
    qkv_bias = None
    if q_bias is not None:
        qkv_bias = jnp.concatenate([q_bias, jnp.zeros_like(v_bias), v_bias])
    x2d = x.reshape(B * N, C)
    qkv = linear_pallas(x2d, w_qkv.T, qkv_bias)              # [B*N, 3*all_head_dim]

    # Head split (single XLA transpose copy; slices/reshapes below are free).
    # TODO(synk): fuse head split/merge into the attention kernel's index_maps once
    # sub-128-lane last-dim blocks are supported without masked stores.
    qkv = qkv.reshape(B, N, 3, num_heads, head_dim)
    qkv = jnp.transpose(qkv, (2, 0, 3, 1, 4))                # [3, B, H, N, Dh]
    q = qkv[0].reshape(B * num_heads, N, head_dim)
    k = qkv[1].reshape(B * num_heads, N, head_dim)
    v = qkv[2].reshape(B * num_heads, N, head_dim)

    o = flash_attention_pallas(q, k, v, scale)               # [B*H, N, Dh]

    o = o.reshape(B, num_heads, N, head_dim)
    o = jnp.transpose(o, (0, 2, 1, 3)).reshape(B * N, all_head_dim)

    out = linear_pallas(o, w_proj.T, b_proj)                 # [B*N, C]
    # TODO(synk): split_attn=True rearrange path and nonzero dropout (would need pltpu PRNG)
    # are not implemented; defaults (split_attn=False, p=0.0) make them no-ops.
    return out.reshape(B, N, C)


# ---------------------------------------------------------------------------
# Pure-JAX reference (matches the PyTorch forward with default flags).
# ---------------------------------------------------------------------------
def attention_reference(x, w_qkv, w_proj, b_proj, num_heads,
                        q_bias=None, v_bias=None, qk_scale=None):
    B, N, C = x.shape
    all_head_dim = w_qkv.shape[0] // 3
    head_dim = all_head_dim // num_heads
    scale = qk_scale if qk_scale is not None else head_dim ** (-0.5)

    qkv = jnp.einsum("bnc,oc->bno", x, w_qkv)
    if q_bias is not None:
        qkv = qkv + jnp.concatenate([q_bias, jnp.zeros_like(v_bias), v_bias])
    qkv = qkv.reshape(B, N, 3, num_heads, head_dim).transpose(2, 0, 3, 1, 4)
    q_r, k_r, v_r = qkv[0] * scale, qkv[1], qkv[2]
    attn = jax.nn.softmax(jnp.einsum("bhqd,bhkd->bhqk", q_r, k_r), axis=-1)
    o_r = jnp.einsum("bhqk,bhkd->bhqd", attn, v_r)
    o_r = o_r.transpose(0, 2, 1, 3).reshape(B, N, all_head_dim)
    return jnp.einsum("bnd,cd->bnc", o_r, w_proj) + b_proj


if __name__ == "__main__":
    key = jax.random.PRNGKey(0)

    # --- Check 1: default config (qkv_bias=False), clean block sizes -------
    B, N, C = 2, 8, 32
    num_heads = 4
    kx, kqkv, kp, kb = jax.random.split(key, 4)
    x = jax.random.normal(kx, (B, N, C), dtype=jnp.float32)
    w_qkv = jax.random.normal(kqkv, (3 * C, C), dtype=jnp.float32) * 0.05
    w_proj = jax.random.normal(kp, (C, C), dtype=jnp.float32) * 0.05
    b_proj = jax.random.normal(kb, (C,), dtype=jnp.float32) * 0.05

    out = jax.block_until_ready(attention_forward(x, w_qkv, w_proj, b_proj, num_heads))
    ref = attention_reference(x, w_qkv, w_proj, b_proj, num_heads)
    assert out.shape == (B, N, C)
    assert jnp.allclose(out, ref, atol=2e-3, rtol=2e-3), float(jnp.max(jnp.abs(out - ref)))

    # --- Check 2: qkv_bias=True and a sequence length that forces padding/masking
    N2 = 10
    k2x, k2q, k2v = jax.random.split(jax.random.PRNGKey(1), 3)
    x2 = jax.random.normal(k2x, (B, N2, C), dtype=jnp.float32)
    q_bias = jax.random.normal(k2q, (C,), dtype=jnp.float32) * 0.05
    v_bias = jax.random.normal(k2v, (C,), dtype=jnp.float32) * 0.05

    out2 = jax.block_until_ready(
        attention_forward(x2, w_qkv, w_proj, b_proj, num_heads, q_bias=q_bias, v_bias=v_bias)
    )
    ref2 = attention_reference(x2, w_qkv, w_proj, b_proj, num_heads, q_bias=q_bias, v_bias=v_bias)
    assert out2.shape == (B, N2, C)
    assert jnp.allclose(out2, ref2, atol=2e-3, rtol=2e-3), float(jnp.max(jnp.abs(out2 - ref2)))

    # --- Check 3: exercise the multi-K-tile accumulator path of the linear kernel
    k3a, k3b = jax.random.split(jax.random.PRNGKey(2))
    xa = jax.random.normal(k3a, (64, 256), dtype=jnp.float32)
    wa = jax.random.normal(k3b, (256, 384), dtype=jnp.float32) * 0.02
    out3 = jax.block_until_ready(linear_pallas(xa, wa, None, tk_max=128))
    ref3 = jnp.dot(xa, wa, precision=jax.lax.Precision.HIGHEST)
    assert jnp.allclose(out3, ref3, atol=2e-2, rtol=2e-2), float(jnp.max(jnp.abs(out3 - ref3)))

    print("KERNEL_OK")
</pallas_src>

<mosaic_0001>
module attributes {stable_mosaic.version = 11 : i64} {
  func.func @_linear_kernel_single_k(%arg0: i32, %arg1: i32, %arg2: memref<16x128xf32, #tpu.memory_space<vmem>>, %arg3: memref<128x128xf32, #tpu.memory_space<vmem>>, %arg4: memref<1x128xf32, #tpu.memory_space<vmem>>, %arg5: memref<16x128xf32, #tpu.memory_space<vmem>>) attributes {dimension_semantics = [#tpu.dimension_semantics<parallel>, #tpu.dimension_semantics<parallel>], iteration_bounds = array<i64: 1, 1>, scalar_prefetch = 0 : i64, scratch_operands = 0 : i64, tpu.core_type = #tpu.core_type<tc>, window_params = [{transform_indices = @transform_0, window_bounds = array<i64: 16, 128>}, {transform_indices = @transform_1, window_bounds = array<i64: 128, 128>}, {transform_indices = @transform_2, window_bounds = array<i64: 1, 128>}, {transform_indices = @transform_3, window_bounds = array<i64: 16, 128>}]} {
    %c0 = arith.constant 0 : index
    %c0_0 = arith.constant 0 : index
    %0 = vector.load %arg2[%c0, %c0_0] : memref<16x128xf32, #tpu.memory_space<vmem>>, vector<16x128xf32>
    %c0_1 = arith.constant 0 : index
    %c0_2 = arith.constant 0 : index
    %1 = vector.load %arg3[%c0_1, %c0_2] : memref<128x128xf32, #tpu.memory_space<vmem>>, vector<128x128xf32>
    %cst = arith.constant dense<0.000000e+00> : vector<16x128xf32>
    %2 = tpu.matmul %0, %1, %cst {dimension_numbers = #tpu.dot_dimension_numbers<[1], [0], [0], [1], [0, 0, 1, 1], [], []>} : vector<16x128xf32>, vector<128x128xf32>, vector<16x128xf32> -> vector<16x128xf32>
    %c0_3 = arith.constant 0 : index
    %c0_4 = arith.constant 0 : index
    %3 = vector.load %arg4[%c0_3, %c0_4] : memref<1x128xf32, #tpu.memory_space<vmem>>, vector<1x128xf32>
    %4 = vector.broadcast %3 : vector<1x128xf32> to vector<16x128xf32>
    %5 = arith.addf %2, %4 : vector<16x128xf32>
    %c0_5 = arith.constant 0 : index
    %c0_6 = arith.constant 0 : index
    %6 = vector.load %arg5[%c0_5, %c0_6] : memref<16x128xf32, #tpu.memory_space<vmem>>, vector<16x128xf32>
    tpu.vector_store %arg5[%c0_5, %c0_6], %5 {strides = array<i32>} : memref<16x128xf32, #tpu.memory_space<vmem>>, vector<16x128xf32>,
    return
  }
  func.func @transform_0(%arg0: i32, %arg1: i32) -> (i32, i32) {
    %c0_i32 = arith.constant 0 : i32
    %c0_i32_0 = arith.constant 0 : i32
    return %arg0, %c0_i32 : i32, i32
  }
  func.func @transform_1(%arg0: i32, %arg1: i32) -> (i32, i32) {
    %c0_i32 = arith.constant 0 : i32
    %c0_i32_0 = arith.constant 0 : i32
    return %c0_i32, %arg1 : i32, i32
  }
  func.func @transform_2(%arg0: i32, %arg1: i32) -> (i32, i32) {
    %c0_i32 = arith.constant 0 : i32
    %c0_i32_0 = arith.constant 0 : i32
    return %c0_i32, %arg1 : i32, i32
  }
  func.func @transform_3(%arg0: i32, %arg1: i32) -> (i32, i32) {
    %c0_i32 = arith.constant 0 : i32
    return %arg0, %arg1 : i32, i32
  }
}

</mosaic_0001>

<llo_original>
// kernel: tpu_custom_call.1
$region0: #{tpu_custom_call.1}
  #allocation0 [shape = 'u32[]', space=smem, size = 0x4, offset = 0x4, fixed_abs, tag = 'smem constant byte address 0x4 - core index']
  #allocation1 [shape = 'u32[144,128]{1,0:T(1,128)}', space=vmem, size = 0x12000, scoped, tag = 'internal scratch']
  %s0 = inlined_call_operand.hbm [shape: f32[16,128], index: 0, kind: input, shape index: {}]
  %s1 = inlined_call_operand.hbm [shape: f32[128,128], index: 1, kind: input, shape index: {}]
  %s2 = inlined_call_operand.vmem [shape: f32[1,128], index: 2, kind: input, shape index: {}]
  %s3 = inlined_call_operand.hbm [shape: f32[16,128], index: 3, kind: output, shape index: {}]
  %s4 = sld [smem:[#allocation0]]
  $region30: #{tpu_custom_call.1} parent=0
    _
  %s6 = ssub.s32 1, %s4
  %s7 = scalar_select 0, %s6, %s4
  $region1: #{tpu_custom_call.1} parent=0
    #allocation2 [shape = 'u8[8192]{0}', space=vmem, size = 0x2000, scoped, tag = 'input window, operand 0, single buffered']
    #allocation3 [shape = 's32[1]{0}', space=sflag, size = 0x4, scoped, tag = 'scoped memory for tpu_custom_call.1']
    #allocation4 [shape = 's32[1]{0}', space=sflag, size = 0x4, scoped, tag = 'scoped memory for tpu_custom_call.1']
    #allocation5 [shape = 'u8[65536]{0}', space=vmem, size = 0x10000, scoped, tag = 'input window, operand 1, single buffered']
    #allocation6 [shape = 's32[1]{0}', space=sflag, size = 0x4, scoped, tag = 'scoped memory for tpu_custom_call.1']
    #allocation7 [shape = 'u8[8192]{0}', space=vmem, size = 0x2000, scoped, tag = 'output window, operand 0, single buffered']
    %8 = vsyncpa [#allocation3], 0
    %9 = vsyncpa [#allocation6], 0
    %10 = vsyncpa [#allocation4], 0
    // Predicated region
    $region2: #{tpu_custom_call.1} parent=1 // pred_check
      _
    $region3: #{tpu_custom_call.1} parent=1 // pred_check_branch
      %12 = sbr.rel (0) target = $region5
    $region4: #{tpu_custom_call.1} parent=1 // pred_region
      %s14 = ssub.s32 256, 256
      %15 = vsyncadd [#allocation3], %s14
      %s16 = sshll.u32 [#allocation2], 4
      %s17 = int_to_ptr.vmem [resolvable:$true] %s16
      %22 = dma.hbm_to_vmem [thread:$0]  %s0, 256, %s17, [#allocation3], 128, 128, 8
    $region5: #{tpu_custom_call.1} parent=1 // pred_fallthru
      _
    // Predicated region
    $region6: #{tpu_custom_call.1} parent=1 // pred_check
      _
    $region7: #{tpu_custom_call.1} parent=1 // pred_check_branch
      %24 = sbr.rel (0) target = $region9
    $region8: #{tpu_custom_call.1} parent=1 // pred_region
      %s26 = ssub.s32 2048, 2048
      %27 = vsyncadd [#allocation6], %s26
      %s28 = sshll.u32 [#allocation5], 4
      %s29 = int_to_ptr.vmem [resolvable:$true] %s28
      %34 = dma.hbm_to_vmem [thread:$0]  %s1, 2048, %s29, [#allocation6], 128, 128, 8
    $region9: #{tpu_custom_call.1} parent=1 // pred_fallthru
      _
    // Predicated region
    $region10: #{tpu_custom_call.1} parent=1 // pred_check
      _
    $region11: #{tpu_custom_call.1} parent=1 // pred_check_branch
      %36 = sbr.rel (0) target = $region13
    $region12: #{tpu_custom_call.1} parent=1 // pred_region
      _
    $region13: #{tpu_custom_call.1} parent=1 // pred_fallthru
      _
    // Predicated region
    $region14: #{tpu_custom_call.1} parent=1 // pred_check
      _
    $region15: #{tpu_custom_call.1} parent=1 // pred_check_branch
      %38 = sbr.rel (0) target = $region17
    $region16: #{tpu_custom_call.1} parent=1 // pred_region
      %39 = dma.done [#allocation3], 256
    $region17: #{tpu_custom_call.1} parent=1 // pred_fallthru
      _
    // Predicated region
    $region18: #{tpu_custom_call.1} parent=1 // pred_check
      _
    $region19: #{tpu_custom_call.1} parent=1 // pred_check_branch
      %41 = sbr.rel (0) target = $region21
    $region20: #{tpu_custom_call.1} parent=1 // pred_region
      %42 = dma.done [#allocation6], 2048
    $region21: #{tpu_custom_call.1} parent=1 // pred_fallthru
      _
    %v43 = vld [vmem:[#allocation2] sm:$0xff]
    %v44 = vld [vmem:[#allocation2 + $0x8] sm:$0xff]
    %v45 = vld [vmem:[#allocation5] sm:$0xff]
    %v46 = vld [vmem:[#allocation5 + $0x8] sm:$0xff]
    %v47 = vld [vmem:[#allocation5 + $0x10] sm:$0xff]
    %v48 = vld [vmem:[#allocation5 + $0x18] sm:$0xff]
    %v49 = vld [vmem:[#allocation5 + $0x20] sm:$0xff]
    %v50 = vld [vmem:[#allocation5 + $0x28] sm:$0xff]
    %v51 = vld [vmem:[#allocation5 + $0x30] sm:$0xff]
    %v52 = vld [vmem:[#allocation5 + $0x38] sm:$0xff]
    %v53 = vld [vmem:[#allocation5 + $0x40] sm:$0xff]
    %v54 = vld [vmem:[#allocation5 + $0x48] sm:$0xff]
    %v55 = vld [vmem:[#allocation5 + $0x50] sm:$0xff]
    %v56 = vld [vmem:[#allocation5 + $0x58] sm:$0xff]
    %v57 = vld [vmem:[#allocation5 + $0x60] sm:$0xff]
    %v58 = vld [vmem:[#allocation5 + $0x68] sm:$0xff]
    %v59 = vld [vmem:[#allocation5 + $0x70] sm:$0xff]
    %v60 = vld [vmem:[#allocation5 + $0x78] sm:$0xff]
    %v61 = vld [vmem:[%s2] sm:$0x1]
    %v63 = vlaneseq
    %v64 = vshrl.u32 %v63, 7
    %v65 = vsub.s32 0, %v64
    %v66 = vrot.slane %v61, %v65
    %68 = vmatprep.subr.mxu0 0.0
    %69 = vmatpush1.msra.mxu0 %v45
    %70 = vmatprep.subr.mxu0 0.0
    %71 = vmatpush1.msra.mxu0 %v46
    %72 = vmatprep.subr.mxu0 0.0
    %73 = vmatpush1.msra.mxu0 %v47
    %74 = vmatprep.subr.mxu0 0.0
    %75 = vmatpush1.msra.mxu0 %v48
    %76 = vmatprep.subr.mxu0 0.0
    %77 = vmatpush1.msra.mxu0 %v49
    %78 = vmatprep.subr.mxu0 0.0
    %79 = vmatpush1.msra.mxu0 %v50
    %80 = vmatprep.subr.mxu0 0.0
    %81 = vmatpush1.msra.mxu0 %v51
    %82 = vmatprep.subr.mxu0 0.0
    %83 = vmatpush1.msra.mxu0 %v52
    %84 = vmatprep.subr.mxu0 0.0
    %85 = vmatpush1.msra.mxu0 %v53
    %86 = vmatprep.subr.mxu0 0.0
    %87 = vmatpush1.msra.mxu0 %v54
    %88 = vmatprep.subr.mxu0 0.0
    %89 = vmatpush1.msra.mxu0 %v55
    %90 = vmatprep.subr.mxu0 0.0
    %91 = vmatpush1.msra.mxu0 %v56
    %92 = vmatprep.subr.mxu0 0.0
    %93 = vmatpush1.msra.mxu0 %v57
    %94 = vmatprep.subr.mxu0 0.0
    %95 = vmatpush1.msra.mxu0 %v58
    %96 = vmatprep.subr.mxu0 0.0
    %97 = vmatpush1.msra.mxu0 %v59
    %98 = vmatprep.subr.mxu0 0.0
    %99 = vmatpush1.msra.mxu0 %v60
    %100 = vmatprep.subr.mxu0 0.0
    %101 = vmatpush1.msra.mxu0 0.0
    %102 = vmatprep.subr.mxu0 0.0
    %103 = vmatpush1.msra.mxu0 0.0
    %104 = vmatprep.subr.mxu0 0.0
    %105 = vmatpush1.msra.mxu0 0.0
    %106 = vmatprep.subr.mxu0 0.0
    %107 = vmatpush1.msra.mxu0 0.0
    %108 = vmatprep.subr.mxu0 0.0
    %109 = vmatpush1.msra.mxu0 0.0
    %110 = vmatprep.subr.mxu0 0.0
    %111 = vmatpush1.msra.mxu0 0.0
    %112 = vmatprep.subr.mxu0 0.0
    %113 = vmatpush1.msra.mxu0 0.0
    %114 = vmatprep.subr.mxu0 0.0
    %115 = vmatpush1.msra.mxu0 0.0
    %116 = vmatprep.subr.mxu0 0.0
    %117 = vmatpush1.msra.mxu0 0.0
    %118 = vmatprep.subr.mxu0 0.0
    %119 = vmatpush1.msra.mxu0 0.0
    %120 = vmatprep.subr.mxu0 0.0
    %121 = vmatpush1.msra.mxu0 0.0
    %122 = vmatprep.subr.mxu0 0.0
    %123 = vmatpush1.msra.mxu0 0.0
    %124 = vmatprep.subr.mxu0 0.0
    %125 = vmatpush1.msra.mxu0 0.0
    %126 = vmatprep.subr.mxu0 0.0
    %127 = vmatpush1.msra.mxu0 0.0
    %128 = vmatprep.subr.mxu0 0.0
    %129 = vmatpush1.msra.mxu0 0.0
    %130 = vmatprep.subr.mxu0 0.0
    %131 = vmatpush1.msra.mxu0 0.0
    %132 = vmatprep.mubr.f32.mxu0 0.0
    %133 = vmatmul.mubr.f32.gmra.mrb[0].mxu0 %v43
    %v134 = vpop.f32.mrb[0].mxu0
    %v135 = vadd.f32 %v66, %v134
    %v136 = vpop.f32.mrb[0].mxu0
    %137 = vmatprep.mubr.f32.mxu0 0.0
    %138 = vmatmul.mubr.f32.gmra.mrb[0].mxu0 %v44
    %v139 = vpop.f32.mrb[0].mxu0
    %v140 = vadd.f32 %v66, %v139
    %v141 = vpop.f32.mrb[0].mxu0
    %142 = vdwg.mxu0
    %143 = vst [vmem:[#allocation7] sm:$0xff] %v135
    %144 = vst [vmem:[#allocation7 + $0x8] sm:$0xff] %v140
    // Predicated region
    $region22: #{tpu_custom_call.1} parent=1 // pred_check
      _
    $region23: #{tpu_custom_call.1} parent=1 // pred_check_branch
      %146 = sbr.rel (0) target = $region25
    $region24: #{tpu_custom_call.1} parent=1 // pred_region
      %s148 = ssub.s32 256, 256
      %149 = vsyncadd [#allocation4], %s148
      %s150 = sshll.u32 [#allocation7], 4
      %s151 = int_to_ptr.vmem [resolvable:$true] %s150
      %156 = dma.vmem_to_hbm [thread:$0]  %s151, 256, %s3, [#allocation4], 128, 128, 8
    $region25: #{tpu_custom_call.1} parent=1 // pred_fallthru
      _
    // Predicated region
    $region26: #{tpu_custom_call.1} parent=1 // pred_check
      _
    $region27: #{tpu_custom_call.1} parent=1 // pred_check_branch
      %158 = sbr.rel (0) target = $region29
    $region28: #{tpu_custom_call.1} parent=1 // pred_region
      %159 = dma.done [#allocation4], 256
    $region29: #{tpu_custom_call.1} parent=1 // pred_fallthru
      _
    %160 = vsyncpa [#allocation3], 1
    %161 = vsyncpa [#allocation6], 1
    %162 = vsyncpa [#allocation4], 1

</llo_original>
